<compile_context>
chip_gen: v6e
topology: v6e:2x2x1
jax: 0.10.0
libtpu: 0.0.40
codegen_flags: <defaults>
</compile_context>

<pallas_src>
import functools

import jax
import jax.numpy as jnp
from jax.experimental import pallas as pl
from jax.experimental.pallas import tpu as pltpu


def _round_up(x, m):
    return ((x + m - 1) // m) * m


def _sublane_align(itemsize):
    return {4: 8, 2: 16, 1: 32}.get(int(itemsize), 8)


def _vmem_limit_bytes():
    """Per-generation VMEM limit with headroom for compiler scratch/pipelining."""
    cap = 64 * 1024 * 1024  # conservative fallback == v7x physical VMEM
    try:
        info = pltpu.get_tpu_info()
        cap = int(getattr(info, "vmem_capacity_bytes", cap))
    except Exception:
        pass
    # ~52 MiB on 64 MiB parts (v7x), ~105 MiB on 128 MiB parts (v5e/v6e).
    return max(32 * 1024 * 1024, min(cap - 12 * 1024 * 1024, int(cap * 0.82)))


def _choose_tiles(B, N, D, itemsize, budget):
    """Pick (batch_tile tb, negatives_tile tn) from the VMEM budget."""
    sub = _sublane_align(itemsize)
    b_full = _round_up(B, 8)

    # Per-(row, negative) bytes per grid step: double-buffered stored-dtype slab
    # plus ~3 f32 working copies (cast, broadcast-diff, square) in the kernel.
    per_bn = D * (2 * itemsize + 3 * 4)
    # Per-row bytes for the (resident, double-buffered) anchor/positive blocks
    # plus one f32 working copy of each.
    per_b = D * (4 * itemsize + 2 * 4)

    # Batch tile: large (amortizes the ~0.35us per-step overhead), but spend at
    # most ~1/4 of the budget on the anchor/positive resident blocks.
    tb_cap = 4096 if budget >= 64 * 1024 * 1024 else 2048
    tb = min(b_full, tb_cap, max(8, (budget // (4 * per_b)) // 8 * 8))
    tb = max(8, tb)
    # v7x megacore: prefer >= 2 batch tiles when the batch is big enough.
    if tb >= b_full and b_full >= 1024:
        tb = _round_up((b_full + 1) // 2, 8)

    # Negatives tile along N with what is left.
    room = budget - tb * per_b
    tn_fit = max(1, room // max(tb * per_bn, 1))
    if tn_fit >= N:
        tn = N                                  # full extent: no padding needed
    else:
        tn = max(sub, (tn_fit // sub) * sub)
        cand = tn                               # prefer a tn that divides N
        while cand > sub and N % cand:
            cand -= sub
        if N % cand == 0:
            tn = cand
    return int(tb), int(tn)


def _triplet_kernel(a_ref, p_ref, n_ref, loss_ref, dmin_ref, *, margin):
    """One (batch-tile, negatives-tile) grid step."""
    n_step = pl.program_id(1)

    @pl.when(n_step == 0)
    def _init():
        dmin_ref[...] = jnp.full(dmin_ref.shape, jnp.inf, dtype=jnp.float32)

    a = a_ref[...].astype(jnp.float32)                 # (tb, D)
    neg = n_ref[...].astype(jnp.float32)               # (tb, tn, D)
    diff = a[:, None, :] - neg                         # (tb, tn, D)
    d = jnp.sum(diff * diff, axis=2)                   # (tb, tn)
    dmin_ref[...] = jnp.minimum(dmin_ref[...],
                                jnp.min(d, axis=1, keepdims=True))

    @pl.when(n_step == pl.num_programs(1) - 1)
    def _finalize():
        p = p_ref[...].astype(jnp.float32)             # (tb, D)
        d_ap = a - p
        dpos = jnp.sum(d_ap * d_ap, axis=1, keepdims=True)   # (tb, 1)
        loss_ref[...] = jnp.maximum(dpos - dmin_ref[...] + margin, 0.0)


def triplet_loss(anchor, positive, negative, margin=1.0, size_average=True,
                 batch_tile=None, n_tile=None):
    """Pallas implementation of TripletLoss.forward."""
    B, D = anchor.shape
    Bn, N, Dn = negative.shape
    assert positive.shape == (B, D) and Bn == B and Dn == D

    itemsize = jnp.dtype(anchor.dtype).itemsize
    sub = _sublane_align(itemsize)
    vmem_limit = _vmem_limit_bytes()
    tb, tn = _choose_tiles(B, N, D, itemsize, int(vmem_limit * 0.85))
    if batch_tile is not None:
        tb = min(_round_up(B, 8), max(8, _round_up(int(batch_tile), 8)))
    if n_tile is not None:
        nt = int(n_tile)
        tn = N if nt >= N else max(sub, (nt // sub) * sub)

    # Pad the batch up to a multiple of tb (padded rows are sliced off before
    # the reduction) and N up to a multiple of tn with *duplicated* negatives
    # (edge padding), which leaves the per-row min unchanged.
    b_pad = _round_up(B, tb)
    n_pad = _round_up(N, tn)
    if b_pad != B:
        pad = b_pad - B
        anchor = jnp.pad(anchor, ((0, pad), (0, 0)))
        positive = jnp.pad(positive, ((0, pad), (0, 0)))
        negative = jnp.pad(negative, ((0, pad), (0, 0), (0, 0)))
    if n_pad != N:
        negative = jnp.pad(negative, ((0, 0), (0, n_pad - N), (0, 0)),
                           mode="edge")

    kernel = functools.partial(_triplet_kernel, margin=float(margin))

    losses = pl.pallas_call(
        kernel,
        out_shape=jax.ShapeDtypeStruct((b_pad, 1), jnp.float32),
        grid_spec=pltpu.PrefetchScalarGridSpec(
            num_scalar_prefetch=0,
            grid=(b_pad // tb, n_pad // tn),
            in_specs=[
                pl.BlockSpec((tb, D), lambda b, n: (b, 0)),          # anchor
                pl.BlockSpec((tb, D), lambda b, n: (b, 0)),          # positive
                pl.BlockSpec((tb, tn, D), lambda b, n: (b, n, 0)),   # negatives
            ],
            out_specs=pl.BlockSpec((tb, 1), lambda b, n: (b, 0)),
            scratch_shapes=[pltpu.VMEM((tb, 1), jnp.float32)],
        ),
        compiler_params=pltpu.CompilerParams(
            dimension_semantics=("parallel", "arbitrary"),
            vmem_limit_bytes=int(vmem_limit),
        ),
    )(anchor, positive, negative)

    # Drop padded rows (each would contribute `margin`) and reduce over the
    # true batch size.
    valid = losses[:B, 0]
    return jnp.mean(valid) if size_average else jnp.sum(valid)


def _triplet_loss_ref(anchor, positive, negative, margin=1.0, size_average=True):
    # Pure-JAX reference mirroring the PyTorch module exactly (f32 math).
    a = anchor.astype(jnp.float32)
    p = positive.astype(jnp.float32)
    n = negative.astype(jnp.float32)
    dpos = jnp.sum((a - p) ** 2, axis=1)
    dneg = jnp.sum((a[:, None, :] - n) ** 2, axis=2)
    dneg_min = jnp.min(dneg, axis=1)
    losses = jax.nn.relu(dpos - dneg_min + margin)
    return jnp.mean(losses) if size_average else jnp.sum(losses)


if __name__ == "__main__":
    key = jax.random.PRNGKey(0)
    keys = jax.random.split(key, 9)

    # Case 1: single-tile path (B and N fit one block), mean and sum.
    B, N, D = 8, 8, 128
    a1 = jax.random.normal(keys[0], (B, D), dtype=jnp.float32)
    p1 = jax.random.normal(keys[1], (B, D), dtype=jnp.float32)
    n1 = jax.random.normal(keys[2], (B, N, D), dtype=jnp.float32)
    out_mean = jax.block_until_ready(triplet_loss(a1, p1, n1, 1.0, True))
    out_sum = jax.block_until_ready(triplet_loss(a1, p1, n1, 1.0, False))
    ref_mean = _triplet_loss_ref(a1, p1, n1, 1.0, True)
    ref_sum = _triplet_loss_ref(a1, p1, n1, 1.0, False)
    assert jnp.allclose(out_mean, ref_mean, rtol=1e-5, atol=1e-5), (out_mean, ref_mean)
    assert jnp.allclose(out_sum, ref_sum, rtol=1e-5, atol=1e-5), (out_sum, ref_sum)

    # Case 2: full 2-D grid — batch padding (20 -> 24, 3 batch tiles) and the
    # negatives axis on the grid (24 / 8 = 3 n-tiles, running-min scratch).
    B2, N2, D2 = 20, 24, 128
    a2 = jax.random.normal(keys[3], (B2, D2), dtype=jnp.float32)
    p2 = jax.random.normal(keys[4], (B2, D2), dtype=jnp.float32)
    n2 = jax.random.normal(keys[5], (B2, N2, D2), dtype=jnp.float32)
    out2 = jax.block_until_ready(
        triplet_loss(a2, p2, n2, 0.5, True, batch_tile=8, n_tile=8))
    ref2 = _triplet_loss_ref(a2, p2, n2, 0.5, True)
    assert jnp.allclose(out2, ref2, rtol=1e-5, atol=1e-5), (out2, ref2)

    # Case 3: bf16 inputs and an N that needs padding (12 -> 16 via edge-pad;
    # duplicated negatives leave the min unchanged), 2 batch tiles, sum mode.
    B3, N3, D3 = 16, 12, 128
    a3 = jax.random.normal(keys[6], (B3, D3), dtype=jnp.float32).astype(jnp.bfloat16)
    p3 = jax.random.normal(keys[7], (B3, D3), dtype=jnp.float32).astype(jnp.bfloat16)
    n3 = jax.random.normal(keys[8], (B3, N3, D3), dtype=jnp.float32).astype(jnp.bfloat16)
    out3 = jax.block_until_ready(
        triplet_loss(a3, p3, n3, 1.0, False, batch_tile=8, n_tile=8))
    ref3 = _triplet_loss_ref(a3, p3, n3, 1.0, False)
    assert jnp.allclose(out3, ref3, rtol=1e-3, atol=1e-3), (out3, ref3)

    print("KERNEL_OK")
</pallas_src>

<mosaic_0001>
module attributes {stable_mosaic.version = 11 : i64} {
  func.func @_triplet_kernel(%arg0: i32, %arg1: i32, %arg2: memref<8x128xf32, #tpu.memory_space<vmem>>, %arg3: memref<8x128xf32, #tpu.memory_space<vmem>>, %arg4: memref<8x8x128xf32, #tpu.memory_space<vmem>>, %arg5: memref<8x1xf32, #tpu.memory_space<vmem>>, %arg6: memref<8x1xf32, #tpu.memory_space<vmem>>) attributes {dimension_semantics = [#tpu.dimension_semantics<parallel>, #tpu.dimension_semantics<arbitrary>], iteration_bounds = array<i64: 1, 1>, scalar_prefetch = 0 : i64, scratch_operands = 1 : i64, tpu.core_type = #tpu.core_type<tc>, window_params = [{transform_indices = @transform_0, window_bounds = array<i64: 8, 128>}, {transform_indices = @transform_1, window_bounds = array<i64: 8, 128>}, {transform_indices = @transform_2, window_bounds = array<i64: 8, 8, 128>}, {transform_indices = @transform_3, window_bounds = array<i64: 8, 1>}]} {
    %c0_i32 = arith.constant 0 : i32
    %0 = arith.cmpi eq, %arg1, %c0_i32 : i32
    %1 = arith.extui %0 : i1 to i32
    %c0_i32_0 = arith.constant 0 : i32
    %2 = arith.cmpi ne, %1, %c0_i32_0 : i32
    scf.if %2 {
      %cst_12 = arith.constant 0x7F800000 : f32
      %18 = vector.broadcast %cst_12 : f32 to vector<8x1xf32>
      %c0_13 = arith.constant 0 : index
      %c0_14 = arith.constant 0 : index
      %19 = vector.load %arg6[%c0_13, %c0_14] : memref<8x1xf32, #tpu.memory_space<vmem>>, vector<8x1xf32>
      tpu.vector_store %arg6[%c0_13, %c0_14], %18 {strides = array<i32>} : memref<8x1xf32, #tpu.memory_space<vmem>>, vector<8x1xf32>,
    } else {
    }
    %c0 = arith.constant 0 : index
    %c0_1 = arith.constant 0 : index
    %3 = vector.load %arg2[%c0, %c0_1] : memref<8x128xf32, #tpu.memory_space<vmem>>, vector<8x128xf32>
    %c0_2 = arith.constant 0 : index
    %c0_3 = arith.constant 0 : index
    %c0_4 = arith.constant 0 : index
    %4 = vector.load %arg4[%c0_2, %c0_3, %c0_4] : memref<8x8x128xf32, #tpu.memory_space<vmem>>, vector<8x8x128xf32>
    %5 = vector.shape_cast %3 : vector<8x128xf32> to vector<8x1x128xf32>
    %6 = vector.broadcast %5 : vector<8x1x128xf32> to vector<8x8x128xf32>
    %7 = arith.subf %6, %4 : vector<8x8x128xf32>
    %8 = arith.mulf %7, %7 : vector<8x8x128xf32>
    %cst = arith.constant dense<0.000000e+00> : vector<8x8xf32>
    %9 = vector.multi_reduction <add>, %8, %cst [2] : vector<8x8x128xf32> to vector<8x8xf32>
    %c0_5 = arith.constant 0 : index
    %c0_6 = arith.constant 0 : index
    %10 = vector.load %arg6[%c0_5, %c0_6] : memref<8x1xf32, #tpu.memory_space<vmem>>, vector<8x1xf32>
    %cst_7 = arith.constant dense<0x7F800000> : vector<8xf32>
    %11 = vector.multi_reduction <minimumf>, %9, %cst_7 [1] : vector<8x8xf32> to vector<8xf32>
    %12 = vector.shape_cast %11 : vector<8xf32> to vector<8x1xf32>
    %13 = arith.minimumf %10, %12 : vector<8x1xf32>
    %c0_8 = arith.constant 0 : index
    %c0_9 = arith.constant 0 : index
    %14 = vector.load %arg6[%c0_8, %c0_9] : memref<8x1xf32, #tpu.memory_space<vmem>>, vector<8x1xf32>
    tpu.vector_store %arg6[%c0_8, %c0_9], %13 {strides = array<i32>} : memref<8x1xf32, #tpu.memory_space<vmem>>, vector<8x1xf32>,
    %c0_i32_10 = arith.constant 0 : i32
    %15 = arith.cmpi eq, %arg1, %c0_i32_10 : i32
    %16 = arith.extui %15 : i1 to i32
    %c0_i32_11 = arith.constant 0 : i32
    %17 = arith.cmpi ne, %16, %c0_i32_11 : i32
    scf.if %17 {
      %c0_12 = arith.constant 0 : index
      %c0_13 = arith.constant 0 : index
      %18 = vector.load %arg3[%c0_12, %c0_13] : memref<8x128xf32, #tpu.memory_space<vmem>>, vector<8x128xf32>
      %19 = arith.subf %3, %18 : vector<8x128xf32>
      %20 = arith.mulf %19, %19 : vector<8x128xf32>
      %cst_14 = arith.constant dense<0.000000e+00> : vector<8xf32>
      %21 = vector.multi_reduction <add>, %20, %cst_14 [1] : vector<8x128xf32> to vector<8xf32>
      %22 = vector.shape_cast %21 : vector<8xf32> to vector<8x1xf32>
      %c0_15 = arith.constant 0 : index
      %c0_16 = arith.constant 0 : index
      %23 = vector.load %arg6[%c0_15, %c0_16] : memref<8x1xf32, #tpu.memory_space<vmem>>, vector<8x1xf32>
      %24 = arith.subf %22, %23 : vector<8x1xf32>
      %cst_17 = arith.constant 1.000000e+00 : f32
      %25 = vector.broadcast %cst_17 : f32 to vector<8x1xf32>
      %26 = arith.addf %24, %25 : vector<8x1xf32>
      %cst_18 = arith.constant 0.000000e+00 : f32
      %27 = vector.broadcast %cst_18 : f32 to vector<8x1xf32>
      %28 = arith.maximumf %26, %27 : vector<8x1xf32>
      %c0_19 = arith.constant 0 : index
      %c0_20 = arith.constant 0 : index
      %29 = vector.load %arg5[%c0_19, %c0_20] : memref<8x1xf32, #tpu.memory_space<vmem>>, vector<8x1xf32>
      tpu.vector_store %arg5[%c0_19, %c0_20], %28 {strides = array<i32>} : memref<8x1xf32, #tpu.memory_space<vmem>>, vector<8x1xf32>,
    } else {
    }
    return
  }
  func.func @transform_0(%arg0: i32, %arg1: i32) -> (i32, i32) {
    %c0_i32 = arith.constant 0 : i32
    %c0_i32_0 = arith.constant 0 : i32
    return %arg0, %c0_i32 : i32, i32
  }
  func.func @transform_1(%arg0: i32, %arg1: i32) -> (i32, i32) {
    %c0_i32 = arith.constant 0 : i32
    %c0_i32_0 = arith.constant 0 : i32
    return %arg0, %c0_i32 : i32, i32
  }
  func.func @transform_2(%arg0: i32, %arg1: i32) -> (i32, i32, i32) {
    %c0_i32 = arith.constant 0 : i32
    %c0_i32_0 = arith.constant 0 : i32
    return %arg0, %arg1, %c0_i32 : i32, i32, i32
  }
  func.func @transform_3(%arg0: i32, %arg1: i32) -> (i32, i32) {
    %c0_i32 = arith.constant 0 : i32
    %c0_i32_0 = arith.constant 0 : i32
    return %arg0, %c0_i32 : i32, i32
  }
}

</mosaic_0001>

<llo_original>
// kernel: tpu_custom_call.1
$region0: #{tpu_custom_call.1}
  #allocation0 [shape = 'u32[]', space=smem, size = 0x4, offset = 0x4, fixed_abs, tag = 'smem constant byte address 0x4 - core index']
  #allocation1 [shape = 'u32[144,128]{1,0:T(1,128)}', space=vmem, size = 0x12000, scoped, tag = 'internal scratch']
  #allocation2 [shape = 'f32[8,1]{1,0:T(8,128)}', space=vmem, size = 0x1000, scoped, tag = 'scratch operand']
  %s0 = inlined_call_operand.hbm [shape: f32[8,128], index: 0, kind: input, shape index: {}]
  %s1 = inlined_call_operand.hbm [shape: f32[8,128], index: 1, kind: input, shape index: {}]
  %s2 = inlined_call_operand.hbm [shape: f32[8,8,128], index: 2, kind: input, shape index: {}]
  %s3 = inlined_call_operand.vmem [shape: f32[8,1], index: 3, kind: output, shape index: {}]
  %s4 = sld [smem:[#allocation0]]
  $region42: #{tpu_custom_call.1} parent=0
    _
  %s6 = ssub.s32 1, %s4
  %s7 = scalar_select 0, %s6, %s4
  $region1: #{tpu_custom_call.1} parent=0
    #allocation3 [shape = 'u8[4096]{0}', space=vmem, size = 0x1000, scoped, tag = 'input window, operand 0, single buffered']
    #allocation4 [shape = 's32[1]{0}', space=sflag, size = 0x4, scoped, tag = 'scoped memory for tpu_custom_call.1']
    #allocation5 [shape = 'u8[4096]{0}', space=vmem, size = 0x1000, scoped, tag = 'input window, operand 1, single buffered']
    #allocation6 [shape = 's32[1]{0}', space=sflag, size = 0x4, scoped, tag = 'scoped memory for tpu_custom_call.1']
    #allocation7 [shape = 'u8[32768]{0}', space=vmem, size = 0x8000, scoped, tag = 'input window, operand 2, single buffered']
    %8 = vsyncpa [#allocation4], 0
    %9 = vsyncpa [#allocation6], 0
    // Predicated region
    $region2: #{tpu_custom_call.1} parent=1 // pred_check
      _
    $region3: #{tpu_custom_call.1} parent=1 // pred_check_branch
      %11 = sbr.rel (0) target = $region5
    $region4: #{tpu_custom_call.1} parent=1 // pred_region
      %s13 = ssub.s32 128, 128
      %14 = vsyncadd [#allocation4], %s13
      %s16 = sshll.u32 [#allocation3], 4
      %s17 = int_to_ptr.vmem [resolvable:$true] %s16
      %19 = dma.hbm_to_vmem [thread:$0]  %s0, 128, %s17, [#allocation4]
    $region5: #{tpu_custom_call.1} parent=1 // pred_fallthru
      _
    // Predicated region
    $region6: #{tpu_custom_call.1} parent=1 // pred_check
      _
    $region7: #{tpu_custom_call.1} parent=1 // pred_check_branch
      %21 = sbr.rel (0) target = $region9
    $region8: #{tpu_custom_call.1} parent=1 // pred_region
      %s23 = ssub.s32 128, 128
      %24 = vsyncadd [#allocation6], %s23
      %s26 = sshll.u32 [#allocation5], 4
      %s27 = int_to_ptr.vmem [resolvable:$true] %s26
      %29 = dma.hbm_to_vmem [thread:$0]  %s1, 128, %s27, [#allocation6]
    $region9: #{tpu_custom_call.1} parent=1 // pred_fallthru
      _
    // Predicated region
    $region10: #{tpu_custom_call.1} parent=1 // pred_check
      _
    $region11: #{tpu_custom_call.1} parent=1 // pred_check_branch
      %31 = sbr.rel (0) target = $region13
    $region12: #{tpu_custom_call.1} parent=1 // pred_region
      %s33 = ssub.s32 1024, 1024
      %34 = vsyncadd [#allocation6], %s33
      %s35 = sshll.u32 [#allocation7], 4
      %s36 = int_to_ptr.vmem [resolvable:$true] %s35
      %41 = dma.hbm_to_vmem [thread:$0]  %s2, 1024, %s36, [#allocation6], 128, 128, 8
    $region13: #{tpu_custom_call.1} parent=1 // pred_fallthru
      _
    // Predicated region
    $region14: #{tpu_custom_call.1} parent=1 // pred_check
      _
    $region15: #{tpu_custom_call.1} parent=1 // pred_check_branch
      %43 = sbr.rel (0) target = $region17
    $region16: #{tpu_custom_call.1} parent=1 // pred_region
      %44 = dma.done [#allocation4], 128
    $region17: #{tpu_custom_call.1} parent=1 // pred_fallthru
      _
    // Predicated region
    $region18: #{tpu_custom_call.1} parent=1 // pred_check
      _
    $region19: #{tpu_custom_call.1} parent=1 // pred_check_branch
      %46 = sbr.rel (0) target = $region21
    $region20: #{tpu_custom_call.1} parent=1 // pred_region
      %47 = dma.done [#allocation6], 128
    $region21: #{tpu_custom_call.1} parent=1 // pred_fallthru
      _
    // Predicated region
    $region22: #{tpu_custom_call.1} parent=1 // pred_check
      _
    $region23: #{tpu_custom_call.1} parent=1 // pred_check_branch
      %49 = sbr.rel (0) target = $region25
    $region24: #{tpu_custom_call.1} parent=1 // pred_region
      %50 = dma.done [#allocation6], 1024
    $region25: #{tpu_custom_call.1} parent=1 // pred_fallthru
      _
    %p51 = scmp.eq.s32.totalorder 0, 0
    // Predicated region
    $region26: #{tpu_custom_call.1} parent=1 // pred_check
      %p52 = pneg %p51
    $region27: #{tpu_custom_call.1} parent=1 // pred_check_branch
      %54 = sbr.rel (%p52) target = $region29
    $region28: #{tpu_custom_call.1} parent=1 // pred_region
      %vm55 = vcmask 7168
      %56 = vst.msk [vmem:[#allocation2] sm:$0xff] %vm55, inf
    $region29: #{tpu_custom_call.1} parent=1 // pred_fallthru
      _
    %v57 = vld [vmem:[#allocation3] sm:$0xff]
    %v58 = vld [vmem:[#allocation7] sm:$0xff]
    %v59 = vld [vmem:[#allocation7 + $0x8] sm:$0xff]
    %v60 = vld [vmem:[#allocation7 + $0x10] sm:$0xff]
    %v61 = vld [vmem:[#allocation7 + $0x18] sm:$0xff]
    %v62 = vld [vmem:[#allocation7 + $0x20] sm:$0xff]
    %v63 = vld [vmem:[#allocation7 + $0x28] sm:$0xff]
    %v64 = vld [vmem:[#allocation7 + $0x30] sm:$0xff]
    %v65 = vld [vmem:[#allocation7 + $0x38] sm:$0xff]
    %v67 = vcombine.high %v57, %v57
    %v69 = vunpack.c.l.s4 1966171168
    %v70 = vunpack.c.0.s8 %v69
    %v71 = vlaneseq
    %v72 = vshrl.u32 %v71, 7
    %v73 = vsub.s32 %v70, %v72
    %v74 = vrot.slane %v57, %v73
    %v76 = vunpack.c.l.s4 1966171168
    %v77 = vunpack.c.0.s8 %v76
    %v78 = vlaneseq
    %v79 = vshrl.u32 %v78, 7
    %v80 = vsub.s32 %v77, %v79
    %v81 = vrot.slane %v67, %v80
    %v82 = vcombine.high %v74, %v74
    %v83 = vcombine.high %v81, %v81
    %v85 = vunpack.c.l.s4 1966171168
    %v86 = vunpack.c.0.s8 %v85
    %v87 = vlaneseq
    %v88 = vshrl.u32 %v87, 7
    %v89 = vsub.s32 %v86, %v88
    %v90 = vrot.slane %v74, %v89
    %v92 = vunpack.c.l.s4 1966171168
    %v93 = vunpack.c.0.s8 %v92
    %v94 = vlaneseq
    %v95 = vshrl.u32 %v94, 7
    %v96 = vsub.s32 %v93, %v95
    %v97 = vrot.slane %v81, %v96
    %v99 = vunpack.c.l.s4 1966171168
    %v100 = vunpack.c.0.s8 %v99
    %v101 = vlaneseq
    %v102 = vshrl.u32 %v101, 7
    %v103 = vsub.s32 %v100, %v102
    %v104 = vrot.slane %v82, %v103
    %v106 = vunpack.c.l.s4 1966171168
    %v107 = vunpack.c.0.s8 %v106
    %v108 = vlaneseq
    %v109 = vshrl.u32 %v108, 7
    %v110 = vsub.s32 %v107, %v109
    %v111 = vrot.slane %v83, %v110
    %v112 = vcombine.high %v90, %v90
    %v113 = vcombine.high %v97, %v97
    %v114 = vcombine.high %v104, %v104
    %v115 = vcombine.high %v111, %v111
    %v116 = vlaneseq
    %v117 = vshrl.u32 %v116, 7
    %v118 = vsub.s32 0, %v117
    %v119 = vrot.slane %v90, %v118
    %v120 = vlaneseq
    %v121 = vshrl.u32 %v120, 7
    %v122 = vsub.s32 0, %v121
    %v123 = vrot.slane %v104, %v122
    %v124 = vlaneseq
    %v125 = vshrl.u32 %v124, 7
    %v126 = vsub.s32 0, %v125
    %v127 = vrot.slane %v112, %v126
    %v128 = vlaneseq
    %v129 = vshrl.u32 %v128, 7
    %v130 = vsub.s32 0, %v129
    %v131 = vrot.slane %v114, %v130
    %v132 = vlaneseq
    %v133 = vshrl.u32 %v132, 7
    %v134 = vsub.s32 0, %v133
    %v135 = vrot.slane %v97, %v134
    %v136 = vlaneseq
    %v137 = vshrl.u32 %v136, 7
    %v138 = vsub.s32 0, %v137
    %v139 = vrot.slane %v111, %v138
    %v140 = vlaneseq
    %v141 = vshrl.u32 %v140, 7
    %v142 = vsub.s32 0, %v141
    %v143 = vrot.slane %v113, %v142
    %v144 = vlaneseq
    %v145 = vshrl.u32 %v144, 7
    %v146 = vsub.s32 0, %v145
    %v147 = vrot.slane %v115, %v146
    %v156 = vsub.f32 %v119, %v58
    %v157 = vsub.f32 %v123, %v59
    %v158 = vsub.f32 %v127, %v60
    %v159 = vsub.f32 %v131, %v61
    %v160 = vsub.f32 %v135, %v62
    %v161 = vsub.f32 %v139, %v63
    %v162 = vsub.f32 %v143, %v64
    %v163 = vsub.f32 %v147, %v65
    %v164 = vmul.f32 %v156, %v156
    %v165 = vmul.f32 %v157, %v157
    %v166 = vmul.f32 %v158, %v158
    %v167 = vmul.f32 %v159, %v159
    %v168 = vmul.f32 %v160, %v160
    %v169 = vmul.f32 %v161, %v161
    %v170 = vmul.f32 %v162, %v162
    %v171 = vmul.f32 %v163, %v163
    %172 = vadd.xlane.f32.xlu0 %v164
    %v173 = vpop.xlane.xlu0 %172
    %174 = vadd.xlane.f32.xlu0 %v165
    %v175 = vpop.xlane.xlu0 %174
    %176 = vadd.xlane.f32.xlu0 %v166
    %v177 = vpop.xlane.xlu0 %176
    %178 = vadd.xlane.f32.xlu0 %v167
    %v179 = vpop.xlane.xlu0 %178
    %180 = vadd.xlane.f32.xlu0 %v168
    %v181 = vpop.xlane.xlu0 %180
    %182 = vadd.xlane.f32.xlu0 %v169
    %v183 = vpop.xlane.xlu0 %182
    %184 = vadd.xlane.f32.xlu0 %v170
    %v185 = vpop.xlane.xlu0 %184
    %186 = vadd.xlane.f32.xlu0 %v171
    %v187 = vpop.xlane.xlu0 %186
    %v188 = vld [vmem:[#allocation2] sm:$0xff]
    %v197 = vlaneseq
    %v198 = vand.u32 %v197, 127
    %v199 = vlaneseq
    %v200 = vshrl.u32 %v199, 7
    %v201 = vsub.s32 %v198, %v200
    %v202 = vrot.slane %v173, %v201
    %v203 = vlaneseq
    %v204 = vshrl.u32 %v203, 7
    %v205 = vsub.s32 %v198, %v204
    %v206 = vrot.slane %v175, %v205
    %v207 = vlaneseq
    %v208 = vshrl.u32 %v207, 7
    %v209 = vsub.s32 %v198, %v208
    %v210 = vrot.slane %v177, %v209
    %v211 = vlaneseq
    %v212 = vshrl.u32 %v211, 7
    %v213 = vsub.s32 %v198, %v212
    %v214 = vrot.slane %v179, %v213
    %v215 = vlaneseq
    %v216 = vshrl.u32 %v215, 7
    %v217 = vsub.s32 %v198, %v216
    %v218 = vrot.slane %v181, %v217
    %v219 = vlaneseq
    %v220 = vshrl.u32 %v219, 7
    %v221 = vsub.s32 %v198, %v220
    %v222 = vrot.slane %v183, %v221
    %v223 = vlaneseq
    %v224 = vshrl.u32 %v223, 7
    %v225 = vsub.s32 %v198, %v224
    %v226 = vrot.slane %v185, %v225
    %v227 = vlaneseq
    %v228 = vshrl.u32 %v227, 7
    %v229 = vsub.s32 %v198, %v228
    %v230 = vrot.slane %v187, %v229
    %vm231 = vcmask 1041409
    %v232 = vsel %vm231, %v206, %v202
    %vm233 = vcmask 1042434
    %v234 = vsel %vm233, %v210, %v232
    %vm235 = vcmask 1043459
    %v236 = vsel %vm235, %v214, %v234
    %vm237 = vcmask 1044484
    %v238 = vsel %vm237, %v218, %v236
    %vm239 = vcmask 1045509
    %v240 = vsel %vm239, %v222, %v238
    %vm241 = vcmask 1046534
    %v242 = vsel %vm241, %v226, %v240
    %vm243 = vcmask 1047559
    %v244 = vsel %vm243, %v230, %v242
    %vm246 = vcmask 64512
    %v247 = vsel %vm246, %v244, inf
    %248 = vmin.xlane.f32.xlu0 %v247
    %v249 = vpop.xlane.xlu0 %248
    %v250 = vmin.f32 %v188, %v249
    %vm251 = vcmask 7168
    %252 = vst.msk [vmem:[#allocation2] sm:$0xff] %vm251, %v250
    // Predicated region
    $region30: #{tpu_custom_call.1} parent=1 // pred_check
      %p253 = pneg %p51
    $region31: #{tpu_custom_call.1} parent=1 // pred_check_branch
      %255 = sbr.rel (%p253) target = $region33
    $region32: #{tpu_custom_call.1} parent=1 // pred_region
      %v256 = vld [vmem:[#allocation5] sm:$0xff]
      %v257 = vsub.f32 %v57, %v256
      %v258 = vmul.f32 %v257, %v257
      %259 = vadd.xlane.f32.xlu0 %v258
      %v260 = vpop.xlane.xlu0 %259
      %v261 = vld [vmem:[#allocation2] sm:$0xff]
      %v262 = vsub.f32 %v260, %v261
      %v263 = vadd.f32 %v262, 1.0
      %v264 = vmax.f32 %v263, 0.0
      %265 = vst.msk [vmem:[%s3] sm:$0xff] %vm251, %v264
    $region33: #{tpu_custom_call.1} parent=1 // pred_fallthru
      _
    // Predicated region
    $region34: #{tpu_custom_call.1} parent=1 // pred_check
      _
    $region35: #{tpu_custom_call.1} parent=1 // pred_check_branch
      %267 = sbr.rel (0) target = $region37
    $region36: #{tpu_custom_call.1} parent=1 // pred_region
      _
    $region37: #{tpu_custom_call.1} parent=1 // pred_fallthru
      _
    // Predicated region
    $region38: #{tpu_custom_call.1} parent=1 // pred_check
      _
    $region39: #{tpu_custom_call.1} parent=1 // pred_check_branch
      %269 = sbr.rel (0) target = $region41
    $region40: #{tpu_custom_call.1} parent=1 // pred_region
      _
    $region41: #{tpu_custom_call.1} parent=1 // pred_fallthru
      _
    %270 = vsyncpa [#allocation4], 1
    %271 = vsyncpa [#allocation6], 1

</llo_original>
